<compile_context>
chip_gen: v7x
topology: tpu7x:2x2x1
jax: 0.10.0
libtpu: 0.0.40
codegen_flags: <defaults>
</compile_context>

<pallas_src>
import functools
import math

import jax
import jax.numpy as jnp
import numpy as np
from jax.experimental import pallas as pl
from jax.experimental.pallas import tpu as pltpu


# ---------------------------------------------------------------------------
# Kernels
# ---------------------------------------------------------------------------
def _fused_kernel_resident(nw_ref, x_ref, w_ref, b_ref, o_ref, *, num_layers):
    # nw_ref : (L,)            softmax layer weights (SMEM, f32)
    # x_ref  : (L, mt, K)      folded encoder-state block (VMEM, compute dtype)
    # w_ref  : (K, Ddec_p)     folded adapter+projection weight (VMEM-resident)
    # b_ref  : (1, Ddec_p)     folded bias (f32)
    # o_ref  : (mt, Ddec_p)    output block
    xs = nw_ref[0] * x_ref[0].astype(jnp.float32)          # f32 VPU accumulate
    for l in range(1, num_layers):
        xs = xs + nw_ref[l] * x_ref[l].astype(jnp.float32)
    acc = jnp.dot(xs.astype(w_ref.dtype), w_ref[...],       # MXU, f32 accumulate
                  preferred_element_type=jnp.float32)
    o_ref[...] = (acc + b_ref[...]).astype(o_ref.dtype)


def _fused_kernel_ktiled(nw_ref, x_ref, w_ref, b_ref, o_ref, acc_ref, *, num_layers):
    # Same as above but with a K grid axis and an f32 VMEM accumulator
    # (used only when the folded weight does not fit the VMEM budget).
    k = pl.program_id(1)

    @pl.when(k == 0)
    def _():
        acc_ref[...] = jnp.zeros_like(acc_ref)

    xs = nw_ref[0] * x_ref[0].astype(jnp.float32)
    for l in range(1, num_layers):
        xs = xs + nw_ref[l] * x_ref[l].astype(jnp.float32)
    acc_ref[...] += jnp.dot(xs.astype(w_ref.dtype), w_ref[...],
                            preferred_element_type=jnp.float32)

    @pl.when(k == pl.num_programs(1) - 1)
    def _():
        o_ref[...] = (acc_ref[...] + b_ref[...]).astype(o_ref.dtype)


# ---------------------------------------------------------------------------
# Tiling helpers
# ---------------------------------------------------------------------------
def _round_up(x, m):
    return ((x + m - 1) // m) * m


def _pick_tile(total, preferred, align):
    """Largest tile <= preferred that divides `total` and is a multiple of
    `align`; falls back to the full extent (always legal)."""
    if total <= preferred:
        return total
    t = (preferred // align) * align
    while t >= align:
        if total % t == 0:
            return t
        t -= align
    return total


def _vmem_capacity_bytes():
    try:
        return int(pltpu.get_tpu_info().vmem_capacity_bytes)
    except Exception:
        return 64 * 1024 * 1024   # conservative fallback (v7x per-core VMEM)


def _select_tiling(l_eff, m_total, k_total, d_dec_p, bx, bw, bo, budget):
    """Pick (m_tile, k_tile, weight_resident) under a VMEM byte budget.

    Double-buffered working set:
      2*L*mt*kt*bx (activations) + 2*kt*d_dec_p*bw (weight)
      + 2*mt*d_dec_p*bo (output)  [+ mt*d_dec_p*4 f32 accumulator if K-tiled]
    """
    m_align = 16 if bx < 4 else 8          # bf16 sublane packing needs 16
    mt_cap = _round_up(max(m_total, 1), m_align)

    def ws(mt, kt, resident):
        s = 2 * l_eff * mt * kt * bx + 2 * kt * d_dec_p * bw + 2 * mt * d_dec_p * bo
        if not resident:
            s += mt * d_dec_p * 4
        return s

    mt_candidates = [c for c in (1024, 512, 256, 128, 64, 32, 16, 8)
                     if c % m_align == 0]

    # Preferred: folded weight fully VMEM-resident (DMA'd once, never re-fetched
    # per M tile), no accumulator scratch.
    for mt in mt_candidates:
        mt_eff = min(mt, mt_cap)
        if ws(mt_eff, k_total, True) <= budget:
            return mt_eff, k_total, True

    # Fallback: K-tiled with f32 accumulator (weight re-fetched per M tile).
    for kt_pref in (2048, 1024, 512, 256, 128):
        kt = _pick_tile(k_total, preferred=kt_pref, align=128)
        for mt in mt_candidates:
            mt_eff = min(mt, mt_cap)
            if ws(mt_eff, kt, False) <= budget:
                return mt_eff, kt, False

    # Last resort: smallest legal tiles.
    return min(m_align, mt_cap), _pick_tile(k_total, preferred=128, align=128), False


# ---------------------------------------------------------------------------
# Parameter prep (done once, NOT per forward call)
# ---------------------------------------------------------------------------
def prepare_speechmix_params(conv_params, proj_w, proj_b, compute_dtype=jnp.bfloat16):
    """Fold the linear Conv1d(k=2,s=2) chain and enc_to_dec_proj into a single
    (down_scale*D_enc, D_dec_padded) weight + (D_dec_padded,) bias.

    Conv1d in channels-last: y[t] = x[2t] @ W[:,:,0].T + x[2t+1] @ W[:,:,1].T + b.
    With no nonlinearity between adapters the whole adapter+projection stack is
    one matmul over the down_scale consecutive input frames per output frame.
    D_dec is zero-padded to a multiple of 128 (lane-dense stores / full MXU
    columns); the caller slices the padding off the output.
    """
    d_dec, d_enc = proj_w.shape
    with jax.default_matmul_precision("highest"):
        mats = [jnp.eye(d_enc, dtype=jnp.float32)]
        bias = jnp.zeros((d_enc,), jnp.float32)
        for cw, cb in conv_params:
            a = cw[:, :, 0].T.astype(jnp.float32)     # acts on even frames
            b = cw[:, :, 1].T.astype(jnp.float32)     # acts on odd frames
            mats = [m @ a for m in mats] + [m @ b for m in mats]
            bias = bias @ (a + b) + cb.astype(jnp.float32)
        p = proj_w.T.astype(jnp.float32)               # (d_enc, d_dec)
        fused_w = jnp.concatenate([m @ p for m in mats], axis=0)   # (ds*d_enc, d_dec)
        fused_b = bias @ p + proj_b.astype(jnp.float32)            # (d_dec,)
    down_scale = len(mats)                              # 2 ** downloop

    d_dec_p = _round_up(d_dec, 128)
    if d_dec_p != d_dec:
        fused_w = jnp.pad(fused_w, ((0, 0), (0, d_dec_p - d_dec)))
        fused_b = jnp.pad(fused_b, (0, d_dec_p - d_dec))
    return fused_w.astype(compute_dtype), fused_b.astype(jnp.float32), down_scale, d_dec


# ---------------------------------------------------------------------------
# SpeechMixEED forward (encoder hidden states -> inputs_embeds)
# ---------------------------------------------------------------------------
def speechmix_eed_forward(hidden_states, weights_sum, fused_w, fused_b, down_scale,
                          d_dec, weighted_sum=True, out_dtype=None):
    L, B, T, d_enc = hidden_states.shape
    assert T % down_scale == 0, "length adapters require T divisible by down_scale"
    k_total, d_dec_p = fused_w.shape
    assert k_total == down_scale * d_enc
    out_dtype = out_dtype or hidden_states.dtype
    compute_dtype = fused_w.dtype

    if weighted_sum:
        norm_w = jax.nn.softmax(weights_sum.astype(jnp.float32), axis=-1)
        x = hidden_states
    else:
        # module uses the encoder's last_hidden_state only
        norm_w = jnp.ones((1,), jnp.float32)
        x = hidden_states[-1:]
    l_eff = x.shape[0]

    # Free row-major reshape: merge batch into M and fold down_scale consecutive
    # frames into the feature (K) axis: (L, B, T, D) -> (L, B*T/ds, ds*D).
    m_total = B * T // down_scale
    x_folded = x.reshape(l_eff, m_total, k_total).astype(compute_dtype)

    bx = jnp.dtype(compute_dtype).itemsize
    bo = jnp.dtype(out_dtype).itemsize
    capacity = _vmem_capacity_bytes()
    budget = int(capacity * 0.65)          # tiling budget (leaves Mosaic headroom)
    vmem_limit = int(capacity * 0.85)

    mt, kt, resident = _select_tiling(l_eff, m_total, k_total, d_dec_p,
                                      bx, bx, bo, budget)

    # Pad M to a tile multiple (zero rows, sliced off after the call) so tiles
    # stay bounded/legal on all generations.
    m_pad = _round_up(m_total, mt)
    if m_pad != m_total:
        x_folded = jnp.pad(x_folded, ((0, 0), (0, m_pad - m_total), (0, 0)))
    grid_m = m_pad // mt
    fused_b2 = fused_b.reshape(1, d_dec_p).astype(jnp.float32)

    if resident:
        kernel = functools.partial(_fused_kernel_resident, num_layers=l_eff)
        out_flat = pl.pallas_call(
            kernel,
            out_shape=jax.ShapeDtypeStruct((m_pad, d_dec_p), out_dtype),
            grid=(grid_m,),
            in_specs=[
                pl.BlockSpec(memory_space=pltpu.MemorySpace.SMEM),           # (L,) weights
                pl.BlockSpec((l_eff, mt, k_total), lambda m: (0, m, 0)),     # hidden states
                pl.BlockSpec((k_total, d_dec_p), lambda m: (0, 0)),          # resident weight
                pl.BlockSpec((1, d_dec_p), lambda m: (0, 0)),                # bias
            ],
            out_specs=pl.BlockSpec((mt, d_dec_p), lambda m: (m, 0)),
            compiler_params=pltpu.CompilerParams(
                dimension_semantics=("parallel",),
                vmem_limit_bytes=vmem_limit),
        )(norm_w, x_folded, fused_w, fused_b2)
    else:
        grid_k = pl.cdiv(k_total, kt)
        kernel = functools.partial(_fused_kernel_ktiled, num_layers=l_eff)
        out_flat = pl.pallas_call(
            kernel,
            out_shape=jax.ShapeDtypeStruct((m_pad, d_dec_p), out_dtype),
            grid=(grid_m, grid_k),
            in_specs=[
                pl.BlockSpec(memory_space=pltpu.MemorySpace.SMEM),
                pl.BlockSpec((l_eff, mt, kt), lambda m, k: (0, m, k)),
                pl.BlockSpec((kt, d_dec_p), lambda m, k: (k, 0)),
                pl.BlockSpec((1, d_dec_p), lambda m, k: (0, 0)),
            ],
            out_specs=pl.BlockSpec((mt, d_dec_p), lambda m, k: (m, 0)),
            scratch_shapes=[pltpu.VMEM((mt, d_dec_p), jnp.float32)],
            compiler_params=pltpu.CompilerParams(
                dimension_semantics=("parallel", "arbitrary"),
                vmem_limit_bytes=vmem_limit),
        )(norm_w, x_folded, fused_w, fused_b2)

    return out_flat[:m_total, :d_dec].reshape(B, T // down_scale, d_dec)


# ---------------------------------------------------------------------------
# Pure-JAX reference (mirrors the module's sequential structure exactly)
# ---------------------------------------------------------------------------
def reference_forward(hidden_states, weights_sum, conv_params, proj_w, proj_b,
                      weighted_sum=True):
    with jax.default_matmul_precision("highest"):
        if weighted_sum:
            nw = jax.nn.softmax(weights_sum.astype(jnp.float32), axis=-1)
            x = jnp.einsum('l,lbtd->btd', nw, hidden_states)
        else:
            x = hidden_states[-1]
        for cw, cb in conv_params:
            xe = x[:, 0::2, :]
            xo = x[:, 1::2, :]
            x = (jnp.einsum('btd,od->bto', xe, cw[:, :, 0])
                 + jnp.einsum('btd,od->bto', xo, cw[:, :, 1])
                 + cb)
        x = jnp.einsum('btd,od->bto', x, proj_w) + proj_b
    return x


if __name__ == "__main__":
    # Small, module-consistent shapes.
    B = 2            # batch
    L = 4            # num_speech_encoder_layers
    T = 16           # encoder output sequence length
    D_ENC = 32       # encoder_model.model.final_proj.in_features
    D_DEC = 48       # decoder_model.config.hidden_size
    DOWN_SCALE = 8
    DOWNLOOP = int(math.log(DOWN_SCALE, 2))   # 3 conv adapters, T: 16 -> 2

    key = jax.random.PRNGKey(0)
    keys = jax.random.split(key, 3 + 2 * DOWNLOOP)

    # Synthetic speech-encoder hidden states (stand-in for the hub model output).
    hidden_states = jax.random.normal(keys[0], (L, B, T, D_ENC), dtype=jnp.float32)

    # Parameters (deterministic init; module inits weights_sum to zeros).
    weights_sum = jnp.zeros((L,), dtype=jnp.float32)
    conv_params = []
    for i in range(DOWNLOOP):
        cw = 0.05 * jax.random.normal(keys[1 + 2 * i], (D_ENC, D_ENC, 2), dtype=jnp.float32)
        cb = 0.01 * jax.random.normal(keys[2 + 2 * i], (D_ENC,), dtype=jnp.float32)
        conv_params.append((cw, cb))
    proj_w = 0.05 * jax.random.normal(keys[1 + 2 * DOWNLOOP], (D_DEC, D_ENC), dtype=jnp.float32)
    proj_b = 0.01 * jax.random.normal(keys[2 + 2 * DOWNLOOP], (D_DEC,), dtype=jnp.float32)

    # Module-faithful references.
    ref = reference_forward(hidden_states, weights_sum, conv_params, proj_w, proj_b, True)
    ref_last = reference_forward(hidden_states, weights_sum, conv_params, proj_w, proj_b, False)

    # ---- 1) Validate the fold math in pure f32 JAX (no kernel) ----
    fw32, fb32, ds, d_dec = prepare_speechmix_params(conv_params, proj_w, proj_b,
                                                     compute_dtype=jnp.float32)
    with jax.default_matmul_precision("highest"):
        nw = jax.nn.softmax(weights_sum.astype(jnp.float32), axis=-1)
        xs32 = jnp.sum(nw[:, None, None, None] * hidden_states, axis=0)
        xs32 = xs32.reshape(-1, fw32.shape[0])
        fold_out = (xs32 @ fw32 + fb32)[:, :d_dec].reshape(B, T // DOWN_SCALE, d_dec)
    np.testing.assert_allclose(np.asarray(fold_out), np.asarray(ref), rtol=1e-5, atol=1e-6)

    # ---- 2) f32 kernel path vs module reference ----
    out32 = jax.block_until_ready(speechmix_eed_forward(
        hidden_states, weights_sum, fw32, fb32, ds, d_dec, weighted_sum=True))
    assert out32.shape == (B, T // DOWN_SCALE, D_DEC), out32.shape
    np.testing.assert_allclose(np.asarray(out32), np.asarray(ref), rtol=5e-3, atol=5e-5)

    out32b = jax.block_until_ready(speechmix_eed_forward(
        hidden_states, weights_sum, fw32, fb32, ds, d_dec, weighted_sum=False))
    np.testing.assert_allclose(np.asarray(out32b), np.asarray(ref_last), rtol=5e-3, atol=5e-5)

    # ---- 3) Perf-default bf16 path vs fused reference with the same
    #         quantization points (bf16 activations/weight, f32 accumulate) ----
    fwbf, fbbf, ds, d_dec = prepare_speechmix_params(conv_params, proj_w, proj_b,
                                                     compute_dtype=jnp.bfloat16)
    outbf = jax.block_until_ready(speechmix_eed_forward(
        hidden_states, weights_sum, fwbf, fbbf, ds, d_dec, weighted_sum=True))
    with jax.default_matmul_precision("highest"):
        xb = hidden_states.astype(jnp.bfloat16).astype(jnp.float32)
        xsb = jnp.sum(nw[:, None, None, None] * xb, axis=0).reshape(-1, fwbf.shape[0])
        ref_bf = (xsb.astype(jnp.bfloat16).astype(jnp.float32) @ fwbf.astype(jnp.float32)
                  + fbbf)[:, :d_dec].reshape(B, T // DOWN_SCALE, d_dec)
    np.testing.assert_allclose(np.asarray(outbf), np.asarray(ref_bf), rtol=2e-2, atol=1e-4)
    # Loose sanity check against the exact f32 module reference.
    np.testing.assert_allclose(np.asarray(outbf), np.asarray(ref), rtol=1e-1, atol=1e-2)

    print("KERNEL_OK")
</pallas_src>

<mosaic_0001>
module attributes {stable_mosaic.version = 11 : i64} {
  func.func @_fused_kernel_resident(%arg0: i32, %arg1: memref<4xf32, #tpu.memory_space<smem>>, %arg2: memref<4x8x256xf32, #tpu.memory_space<vmem>>, %arg3: memref<256x128xf32, #tpu.memory_space<vmem>>, %arg4: memref<1x128xf32, #tpu.memory_space<vmem>>, %arg5: memref<8x128xf32, #tpu.memory_space<vmem>>) attributes {dimension_semantics = [#tpu.dimension_semantics<parallel>], iteration_bounds = array<i64: 1>, scalar_prefetch = 0 : i64, scratch_operands = 0 : i64, tpu.core_type = #tpu.core_type<tc>, window_params = [{transform_indices = @transform_0, window_bounds = array<i64: 4>}, {transform_indices = @transform_1, window_bounds = array<i64: 4, 8, 256>}, {pipeline_mode = #tpu.pipeline_mode<synchronous>, transform_indices = @transform_2, window_bounds = array<i64: 256, 128>}, {pipeline_mode = #tpu.pipeline_mode<synchronous>, transform_indices = @transform_3, window_bounds = array<i64: 1, 128>}, {transform_indices = @transform_4, window_bounds = array<i64: 8, 128>}]} {
    %c0 = arith.constant 0 : index
    %0 = memref.load %arg1[%c0] : memref<4xf32, #tpu.memory_space<smem>>
    %c0_0 = arith.constant 0 : index
    %c0_1 = arith.constant 0 : index
    %c0_2 = arith.constant 0 : index
    %1 = vector.load %arg2[%c0_0, %c0_1, %c0_2] : memref<4x8x256xf32, #tpu.memory_space<vmem>>, vector<1x8x256xf32>
    %2 = vector.shape_cast %1 : vector<1x8x256xf32> to vector<8x256xf32>
    %3 = vector.broadcast %0 : f32 to vector<8x256xf32>
    %4 = arith.mulf %3, %2 : vector<8x256xf32>
    %c1 = arith.constant 1 : index
    %5 = memref.load %arg1[%c1] : memref<4xf32, #tpu.memory_space<smem>>
    %c1_3 = arith.constant 1 : index
    %c0_4 = arith.constant 0 : index
    %c0_5 = arith.constant 0 : index
    %6 = vector.load %arg2[%c1_3, %c0_4, %c0_5] : memref<4x8x256xf32, #tpu.memory_space<vmem>>, vector<1x8x256xf32>
    %7 = vector.shape_cast %6 : vector<1x8x256xf32> to vector<8x256xf32>
    %8 = vector.broadcast %5 : f32 to vector<8x256xf32>
    %9 = arith.mulf %8, %7 : vector<8x256xf32>
    %10 = arith.addf %4, %9 : vector<8x256xf32>
    %c2 = arith.constant 2 : index
    %11 = memref.load %arg1[%c2] : memref<4xf32, #tpu.memory_space<smem>>
    %c2_6 = arith.constant 2 : index
    %c0_7 = arith.constant 0 : index
    %c0_8 = arith.constant 0 : index
    %12 = vector.load %arg2[%c2_6, %c0_7, %c0_8] : memref<4x8x256xf32, #tpu.memory_space<vmem>>, vector<1x8x256xf32>
    %13 = vector.shape_cast %12 : vector<1x8x256xf32> to vector<8x256xf32>
    %14 = vector.broadcast %11 : f32 to vector<8x256xf32>
    %15 = arith.mulf %14, %13 : vector<8x256xf32>
    %16 = arith.addf %10, %15 : vector<8x256xf32>
    %c3 = arith.constant 3 : index
    %17 = memref.load %arg1[%c3] : memref<4xf32, #tpu.memory_space<smem>>
    %c3_9 = arith.constant 3 : index
    %c0_10 = arith.constant 0 : index
    %c0_11 = arith.constant 0 : index
    %18 = vector.load %arg2[%c3_9, %c0_10, %c0_11] : memref<4x8x256xf32, #tpu.memory_space<vmem>>, vector<1x8x256xf32>
    %19 = vector.shape_cast %18 : vector<1x8x256xf32> to vector<8x256xf32>
    %20 = vector.broadcast %17 : f32 to vector<8x256xf32>
    %21 = arith.mulf %20, %19 : vector<8x256xf32>
    %22 = arith.addf %16, %21 : vector<8x256xf32>
    %c0_12 = arith.constant 0 : index
    %c0_13 = arith.constant 0 : index
    %23 = vector.load %arg3[%c0_12, %c0_13] : memref<256x128xf32, #tpu.memory_space<vmem>>, vector<256x128xf32>
    %cst = arith.constant dense<0.000000e+00> : vector<8x128xf32>
    %24 = tpu.matmul %22, %23, %cst {dimension_numbers = #tpu.dot_dimension_numbers<[1], [0], [0], [1], [0, 0, 1, 1], [], []>} : vector<8x256xf32>, vector<256x128xf32>, vector<8x128xf32> -> vector<8x128xf32>
    %c0_14 = arith.constant 0 : index
    %c0_15 = arith.constant 0 : index
    %25 = vector.load %arg4[%c0_14, %c0_15] : memref<1x128xf32, #tpu.memory_space<vmem>>, vector<1x128xf32>
    %26 = vector.broadcast %25 : vector<1x128xf32> to vector<8x128xf32>
    %27 = arith.addf %24, %26 : vector<8x128xf32>
    %c0_16 = arith.constant 0 : index
    %c0_17 = arith.constant 0 : index
    %28 = vector.load %arg5[%c0_16, %c0_17] : memref<8x128xf32, #tpu.memory_space<vmem>>, vector<8x128xf32>
    tpu.vector_store %arg5[%c0_16, %c0_17], %27 {strides = array<i32>} : memref<8x128xf32, #tpu.memory_space<vmem>>, vector<8x128xf32>,
    return
  }
  func.func @transform_0(%arg0: i32) -> i32 {
    %c0_i32 = arith.constant 0 : i32
    %c0_i32_0 = arith.constant 0 : i32
    return %c0_i32 : i32
  }
  func.func @transform_1(%arg0: i32) -> (i32, i32, i32) {
    %c0_i32 = arith.constant 0 : i32
    %c0_i32_0 = arith.constant 0 : i32
    %c0_i32_1 = arith.constant 0 : i32
    return %c0_i32, %arg0, %c0_i32_0 : i32, i32, i32
  }
  func.func @transform_2(%arg0: i32) -> (i32, i32) {
    %c0_i32 = arith.constant 0 : i32
    %c0_i32_0 = arith.constant 0 : i32
    %c0_i32_1 = arith.constant 0 : i32
    return %c0_i32, %c0_i32_0 : i32, i32
  }
  func.func @transform_3(%arg0: i32) -> (i32, i32) {
    %c0_i32 = arith.constant 0 : i32
    %c0_i32_0 = arith.constant 0 : i32
    %c0_i32_1 = arith.constant 0 : i32
    return %c0_i32, %c0_i32_0 : i32, i32
  }
  func.func @transform_4(%arg0: i32) -> (i32, i32) {
    %c0_i32 = arith.constant 0 : i32
    %c0_i32_0 = arith.constant 0 : i32
    return %arg0, %c0_i32 : i32, i32
  }
}

</mosaic_0001>

<llo_original>
// kernel: tpu_custom_call.1
$region0: #{tpu_custom_call.1}
  #allocation0 [shape = 'u32[]', space=smem, size = 0x4, offset = 0x4, fixed_abs, tag = 'smem constant byte address 0x4 - core index']
  #allocation1 [shape = 'u32[144,128]{1,0:T(1,128)}', space=vmem, size = 0x12000, scoped, tag = 'internal scratch']
  %s0 = inlined_call_operand.hbm [shape: f32[4], index: 0, kind: input, shape index: {}]
  %s1 = inlined_call_operand.hbm [shape: f32[4,8,256], index: 1, kind: input, shape index: {}]
  %s2 = inlined_call_operand.hbm [shape: f32[256,128], index: 2, kind: input, shape index: {}]
  %s3 = inlined_call_operand.vmem [shape: f32[1,128], index: 3, kind: input, shape index: {}]
  %s4 = inlined_call_operand.hbm [shape: f32[8,128], index: 4, kind: output, shape index: {}]
  %s5 = sld [smem:[#allocation0]]
  $region38: #{tpu_custom_call.1} parent=0
    _
  %s7 = ssub.s32 1, %s5
  %s8 = scalar_select 0, %s7, %s5
  $region1: #{tpu_custom_call.1} parent=0
    #allocation2 [shape = 'u8[512]{0}', space=smem, size = 0x200, scoped, tag = 'input window, operand 0, single buffered']
    #allocation3 [shape = 's32[1]{0}', space=sflag, size = 0x4, scoped, tag = 'scoped memory for tpu_custom_call.1']
    #allocation4 [shape = 's32[1]{0}', space=sflag, size = 0x4, scoped, tag = 'scoped memory for tpu_custom_call.1']
    #allocation5 [shape = 's32[1]{0}', space=sflag, size = 0x4, scoped, tag = 'scoped memory for tpu_custom_call.1']
    #allocation6 [shape = 'u8[32768]{0}', space=vmem, size = 0x8000, scoped, tag = 'input window, operand 1, single buffered']
    #allocation7 [shape = 'u8[131072]{0}', space=vmem, size = 0x20000, scoped, tag = 'input window, operand 2, single buffered']
    #allocation8 [shape = 's32[1]{0}', space=sflag, size = 0x4, scoped, tag = 'scoped memory for tpu_custom_call.1']
    #allocation9 [shape = 'u8[4096]{0}', space=vmem, size = 0x1000, scoped, tag = 'output window, operand 0, single buffered']
    %9 = vsyncpa [#allocation5], 0
    %10 = vsyncpa [#allocation3], 0
    %11 = vsyncpa [#allocation8], 0
    %12 = vsyncpa [#allocation4], 0
    // Predicated region
    $region2: #{tpu_custom_call.1} parent=1 // pred_check
      _
    $region3: #{tpu_custom_call.1} parent=1 // pred_check_branch
      %14 = sbr.rel (0) target = $region5
    $region4: #{tpu_custom_call.1} parent=1 // pred_region
      %s16 = ssub.s32 16, 16
      %17 = vsyncadd [#allocation5], %s16
      %20 = dma.hbm_to_smem %s0, 16, [#allocation2], [#allocation5]
    $region5: #{tpu_custom_call.1} parent=1 // pred_fallthru
      _
    // Predicated region
    $region6: #{tpu_custom_call.1} parent=1 // pred_check
      _
    $region7: #{tpu_custom_call.1} parent=1 // pred_check_branch
      %22 = sbr.rel (0) target = $region9
    $region8: #{tpu_custom_call.1} parent=1 // pred_region
      %s24 = ssub.s32 1024, 1024
      %25 = vsyncadd [#allocation3], %s24
      %s26 = sshll.u32 [#allocation6], 4
      %s27 = int_to_ptr.vmem [resolvable:$true] %s26
      %32 = dma.hbm_to_vmem [thread:$0]  %s1, 1024, %s27, [#allocation3], 256, 256, 16
    $region9: #{tpu_custom_call.1} parent=1 // pred_fallthru
      _
    // Predicated region
    $region10: #{tpu_custom_call.1} parent=1 // pred_check
      _
    $region11: #{tpu_custom_call.1} parent=1 // pred_check_branch
      %34 = sbr.rel (0) target = $region13
    $region12: #{tpu_custom_call.1} parent=1 // pred_region
      %s36 = ssub.s32 4096, 4096
      %37 = vsyncadd [#allocation8], %s36
      %s38 = sshll.u32 [#allocation7], 4
      %s39 = int_to_ptr.vmem [resolvable:$true] %s38
      %44 = dma.hbm_to_vmem [thread:$0]  %s2, 4096, %s39, [#allocation8], 128, 128, 8
    $region13: #{tpu_custom_call.1} parent=1 // pred_fallthru
      _
    // Predicated region
    $region14: #{tpu_custom_call.1} parent=1 // pred_check
      _
    $region15: #{tpu_custom_call.1} parent=1 // pred_check_branch
      %46 = sbr.rel (0) target = $region17
    $region16: #{tpu_custom_call.1} parent=1 // pred_region
      _
    $region17: #{tpu_custom_call.1} parent=1 // pred_fallthru
      _
    // Predicated region
    $region18: #{tpu_custom_call.1} parent=1 // pred_check
      _
    $region19: #{tpu_custom_call.1} parent=1 // pred_check_branch
      %48 = sbr.rel (0) target = $region21
    $region20: #{tpu_custom_call.1} parent=1 // pred_region
      %49 = dma.done [#allocation5], 16
    $region21: #{tpu_custom_call.1} parent=1 // pred_fallthru
      _
    // Predicated region
    $region22: #{tpu_custom_call.1} parent=1 // pred_check
      _
    $region23: #{tpu_custom_call.1} parent=1 // pred_check_branch
      %51 = sbr.rel (0) target = $region25
    $region24: #{tpu_custom_call.1} parent=1 // pred_region
      %52 = dma.done [#allocation3], 1024
    $region25: #{tpu_custom_call.1} parent=1 // pred_fallthru
      _
    // Predicated region
    $region26: #{tpu_custom_call.1} parent=1 // pred_check
      _
    $region27: #{tpu_custom_call.1} parent=1 // pred_check_branch
      %54 = sbr.rel (0) target = $region29
    $region28: #{tpu_custom_call.1} parent=1 // pred_region
      %55 = dma.done [#allocation8], 4096
    $region29: #{tpu_custom_call.1} parent=1 // pred_fallthru
      _
    %56 = sfence
    %s57 = sld [smem:[#allocation2]]
    %v58 = vld [vmem:[#allocation6] sm:$0xff]
    %v59 = vld [vmem:[#allocation6 + $0x8] sm:$0xff]
    %v60 = vstv %s57
    %v61 = vmul.f32 %v60, %v58
    %v62 = vmul.f32 %v60, %v59
    %s63 = sld [smem:[#allocation2 + $0x1]]
    %s64 = scalar_lea.vmem [#allocation6], 16
    %v65 = vld [vmem:[%s64] sm:$0xff]
    %v66 = vld [vmem:[%s64 + $0x8] sm:$0xff]
    %v67 = vstv %s63
    %v68 = vmul.f32 %v67, %v65
    %v69 = vmul.f32 %v67, %v66
    %v70 = vadd.f32 %v61, %v68
    %v71 = vadd.f32 %v62, %v69
    %s72 = sld [smem:[#allocation2 + $0x2]]
    %s73 = scalar_lea.vmem [#allocation6], 32
    %v74 = vld [vmem:[%s73] sm:$0xff]
    %v75 = vld [vmem:[%s73 + $0x8] sm:$0xff]
    %v76 = vstv %s72
    %v77 = vmul.f32 %v76, %v74
    %v78 = vmul.f32 %v76, %v75
    %v79 = vadd.f32 %v70, %v77
    %v80 = vadd.f32 %v71, %v78
    %s81 = sld [smem:[#allocation2 + $0x3]]
    %s82 = scalar_lea.vmem [#allocation6], 48
    %v83 = vld [vmem:[%s82] sm:$0xff]
    %v84 = vld [vmem:[%s82 + $0x8] sm:$0xff]
    %v85 = vstv %s81
    %v86 = vmul.f32 %v85, %v83
    %v87 = vmul.f32 %v85, %v84
    %v88 = vadd.f32 %v79, %v86
    %v89 = vadd.f32 %v80, %v87
    %v90 = vld [vmem:[#allocation7] sm:$0xff]
    %v91 = vld [vmem:[#allocation7 + $0x8] sm:$0xff]
    %v92 = vld [vmem:[#allocation7 + $0x10] sm:$0xff]
    %v93 = vld [vmem:[#allocation7 + $0x18] sm:$0xff]
    %v94 = vld [vmem:[#allocation7 + $0x20] sm:$0xff]
    %v95 = vld [vmem:[#allocation7 + $0x28] sm:$0xff]
    %v96 = vld [vmem:[#allocation7 + $0x30] sm:$0xff]
    %v97 = vld [vmem:[#allocation7 + $0x38] sm:$0xff]
    %v98 = vld [vmem:[#allocation7 + $0x40] sm:$0xff]
    %v99 = vld [vmem:[#allocation7 + $0x48] sm:$0xff]
    %v100 = vld [vmem:[#allocation7 + $0x50] sm:$0xff]
    %v101 = vld [vmem:[#allocation7 + $0x58] sm:$0xff]
    %v102 = vld [vmem:[#allocation7 + $0x60] sm:$0xff]
    %v103 = vld [vmem:[#allocation7 + $0x68] sm:$0xff]
    %v104 = vld [vmem:[#allocation7 + $0x70] sm:$0xff]
    %v105 = vld [vmem:[#allocation7 + $0x78] sm:$0xff]
    %v106 = vld [vmem:[#allocation7 + $0x80] sm:$0xff]
    %v107 = vld [vmem:[#allocation7 + $0x88] sm:$0xff]
    %v108 = vld [vmem:[#allocation7 + $0x90] sm:$0xff]
    %v109 = vld [vmem:[#allocation7 + $0x98] sm:$0xff]
    %v110 = vld [vmem:[#allocation7 + $0xa0] sm:$0xff]
    %v111 = vld [vmem:[#allocation7 + $0xa8] sm:$0xff]
    %v112 = vld [vmem:[#allocation7 + $0xb0] sm:$0xff]
    %v113 = vld [vmem:[#allocation7 + $0xb8] sm:$0xff]
    %v114 = vld [vmem:[#allocation7 + $0xc0] sm:$0xff]
    %v115 = vld [vmem:[#allocation7 + $0xc8] sm:$0xff]
    %v116 = vld [vmem:[#allocation7 + $0xd0] sm:$0xff]
    %v117 = vld [vmem:[#allocation7 + $0xd8] sm:$0xff]
    %v118 = vld [vmem:[#allocation7 + $0xe0] sm:$0xff]
    %v119 = vld [vmem:[#allocation7 + $0xe8] sm:$0xff]
    %v120 = vld [vmem:[#allocation7 + $0xf0] sm:$0xff]
    %v121 = vld [vmem:[#allocation7 + $0xf8] sm:$0xff]
    %v122 = vld [vmem:[%s3] sm:$0x1]
    %v124 = vlaneseq
    %v125 = vshrl.u32 %v124, 7
    %v126 = vsub.s32 0, %v125
    %v127 = vrot.slane %v122, %v126
    %129 = vmatprep.subr.mxu0 0.0
    %130 = vmatpush1.msra.mxu0 %v90
    %131 = vmatprep.subr.mxu0 0.0
    %132 = vmatpush1.msra.mxu0 %v91
    %133 = vmatprep.subr.mxu0 0.0
    %134 = vmatpush1.msra.mxu0 %v92
    %135 = vmatprep.subr.mxu0 0.0
    %136 = vmatpush1.msra.mxu0 %v93
    %137 = vmatprep.subr.mxu0 0.0
    %138 = vmatpush1.msra.mxu0 %v94
    %139 = vmatprep.subr.mxu0 0.0
    %140 = vmatpush1.msra.mxu0 %v95
    %141 = vmatprep.subr.mxu0 0.0
    %142 = vmatpush1.msra.mxu0 %v96
    %143 = vmatprep.subr.mxu0 0.0
    %144 = vmatpush1.msra.mxu0 %v97
    %145 = vmatprep.subr.mxu0 0.0
    %146 = vmatpush1.msra.mxu0 %v98
    %147 = vmatprep.subr.mxu0 0.0
    %148 = vmatpush1.msra.mxu0 %v99
    %149 = vmatprep.subr.mxu0 0.0
    %150 = vmatpush1.msra.mxu0 %v100
    %151 = vmatprep.subr.mxu0 0.0
    %152 = vmatpush1.msra.mxu0 %v101
    %153 = vmatprep.subr.mxu0 0.0
    %154 = vmatpush1.msra.mxu0 %v102
    %155 = vmatprep.subr.mxu0 0.0
    %156 = vmatpush1.msra.mxu0 %v103
    %157 = vmatprep.subr.mxu0 0.0
    %158 = vmatpush1.msra.mxu0 %v104
    %159 = vmatprep.subr.mxu0 0.0
    %160 = vmatpush1.msra.mxu0 %v105
    %161 = vmatprep.subr.mxu0 0.0
    %162 = vmatpush1.msra.mxu0 %v106
    %163 = vmatprep.subr.mxu0 0.0
    %164 = vmatpush1.msra.mxu0 %v107
    %165 = vmatprep.subr.mxu0 0.0
    %166 = vmatpush1.msra.mxu0 %v108
    %167 = vmatprep.subr.mxu0 0.0
    %168 = vmatpush1.msra.mxu0 %v109
    %169 = vmatprep.subr.mxu0 0.0
    %170 = vmatpush1.msra.mxu0 %v110
    %171 = vmatprep.subr.mxu0 0.0
    %172 = vmatpush1.msra.mxu0 %v111
    %173 = vmatprep.subr.mxu0 0.0
    %174 = vmatpush1.msra.mxu0 %v112
    %175 = vmatprep.subr.mxu0 0.0
    %176 = vmatpush1.msra.mxu0 %v113
    %177 = vmatprep.subr.mxu0 0.0
    %178 = vmatpush1.msra.mxu0 %v114
    %179 = vmatprep.subr.mxu0 0.0
    %180 = vmatpush1.msra.mxu0 %v115
    %181 = vmatprep.subr.mxu0 0.0
    %182 = vmatpush1.msra.mxu0 %v116
    %183 = vmatprep.subr.mxu0 0.0
    %184 = vmatpush1.msra.mxu0 %v117
    %185 = vmatprep.subr.mxu0 0.0
    %186 = vmatpush1.msra.mxu0 %v118
    %187 = vmatprep.subr.mxu0 0.0
    %188 = vmatpush1.msra.mxu0 %v119
    %189 = vmatprep.subr.mxu0 0.0
    %190 = vmatpush1.msra.mxu0 %v120
    %191 = vmatprep.subr.mxu0 0.0
    %192 = vmatpush1.msra.mxu0 %v121
    %193 = vmatprep.mubr.f32.mxu0 %v89
    %194 = vmatmul.mubr.f32.gmra.mrb[0].mxu0 %v88
    %v195 = vpop.f32.mrb[0].mxu0
    %v196 = vadd.f32 %v127, %v195
    %v197 = vpop.f32.mrb[0].mxu0
    %198 = vdwg.mxu0
    %199 = vst [vmem:[#allocation9] sm:$0xff] %v196
    // Predicated region
    $region30: #{tpu_custom_call.1} parent=1 // pred_check
      _
    $region31: #{tpu_custom_call.1} parent=1 // pred_check_branch
      %201 = sbr.rel (0) target = $region33
    $region32: #{tpu_custom_call.1} parent=1 // pred_region
      %s203 = ssub.s32 128, 128
      %204 = vsyncadd [#allocation4], %s203
      %s206 = sshll.u32 [#allocation9], 4
      %s207 = int_to_ptr.vmem [resolvable:$true] %s206
      %209 = dma.vmem_to_hbm [thread:$0]  %s207, 128, %s4, [#allocation4]
    $region33: #{tpu_custom_call.1} parent=1 // pred_fallthru
      _
    // Predicated region
    $region34: #{tpu_custom_call.1} parent=1 // pred_check
      _
    $region35: #{tpu_custom_call.1} parent=1 // pred_check_branch
      %211 = sbr.rel (0) target = $region37
    $region36: #{tpu_custom_call.1} parent=1 // pred_region
      %212 = dma.done [#allocation4], 128
    $region37: #{tpu_custom_call.1} parent=1 // pred_fallthru
      _
    %213 = vsyncpa [#allocation3], 1
    %214 = vsyncpa [#allocation8], 1
    %215 = vsyncpa [#allocation4], 1
    %216 = vsyncpa [#allocation5], 1

</llo_original>
